<compile_context>
chip_gen: v5e
topology: v5e:2x2
jax: 0.10.0
libtpu: 0.0.40
codegen_flags: <defaults>
</compile_context>

<pallas_src>
import functools

import jax
import jax.numpy as jnp
from jax.experimental import pallas as pl
from jax.experimental.pallas import tpu as pltpu


def _round_up(x, m):
    return ((x + m - 1) // m) * m


# ------------------------------------------------------------------ fused kernel
def fused_attention_kernel(x_all_ref, x_tile_ref, wq_ref, bq_ref,
                           wkv_ref, bkv_ref, attw_ref, psum_ref,
                           *, n_valid, scale, latent):
    """One tile of query rows; K/V for all rows are (re)computed in-kernel.

    x_all_ref : (n_pad, E)   zero-padded emb, resident (constant index_map)
    x_tile_ref: (tm, E)      this tile's query rows of the same padded emb
    wq_ref    : (E, L), bq_ref: (1, L)
    wkv_ref   : (E, 2L)      Wk | Wv fused,  bkv_ref: (1, 2L)
    attw_ref  : (tm, n_pad)  softmax attention weights (lane-dense slab)
    psum_ref  : (8, L)       per-tile partial of sum_over_valid_rows(attw @ V),
                             replicated over 8 sublanes for aligned stores
    """
    i = pl.program_id(0)
    tm = x_tile_ref.shape[0]
    n_pad = x_all_ref.shape[0]

    # Q for this tile; fold the 1/sqrt(E) scale into Q (L-wide, not n_pad-wide).
    q = (jnp.dot(x_tile_ref[...], wq_ref[...],
                 preferred_element_type=jnp.float32) + bq_ref[...]) * scale

    # Fused K|V projection for all rows: one wide (E -> 2L) MXU pass.
    kv = jnp.dot(x_all_ref[...], wkv_ref[...],
                 preferred_element_type=jnp.float32) + bkv_ref[...]
    k = kv[:, :latent]          # (n_pad, L)
    v = kv[:, latent:]          # (n_pad, L)

    # scores (tm, n_pad) = Q @ K^T (contract latent dims).
    s = jax.lax.dot_general(q, k, (((1,), (1,)), ((), ())),
                            preferred_element_type=jnp.float32)

    if n_valid < n_pad:  # static at trace time: mask padded key columns
        col = jax.lax.broadcasted_iota(jnp.int32, s.shape, 1)
        s = jnp.where(col < n_valid, s, -1e30)

    # Numerically-stable softmax; per-row reciprocal + multiply (not full-tile divide).
    m = jnp.max(s, axis=-1, keepdims=True)
    p = jnp.exp(s - m)
    denom = jnp.sum(p, axis=-1, keepdims=True)
    w = p * pl.reciprocal(denom, approx=False)
    attw_ref[...] = w.astype(attw_ref.dtype)

    # Partial contribution to sum_over_valid_rows(attw @ V):
    #   colsum of valid rows of w  (1, n_pad), then one (1,n_pad)@(n_pad,L) matvec.
    if n_valid < n_pad:  # padded query rows carry garbage (q = bq) -> mask them out
        row = jax.lax.broadcasted_iota(jnp.int32, (tm, 1), 0) + i * tm
        w_sum_src = jnp.where(row < n_valid, w, 0.0)
    else:
        w_sum_src = w
    wsum = jnp.sum(w_sum_src, axis=0, keepdims=True)                    # (1, n_pad)
    psum = jnp.dot(wsum, v, preferred_element_type=jnp.float32)         # (1, L)
    psum_ref[...] = jnp.broadcast_to(psum, psum_ref.shape).astype(psum_ref.dtype)


# ------------------------------------------------------------------ wrapper
@functools.partial(jax.jit, static_argnames=("tile_rows", "eval_mode"))
def sg_models_forward(emb, params, tile_rows=64, eval_mode=False):
    """emb: (N, embed_dim) -> (att_weights (N,N), z (embed_dim,), output (hvgs,))."""
    wq, bq, wk, bk, wv, bv, wo, bo, wd, bd = params
    N, E = emb.shape
    L = wq.shape[1]
    dtype = emb.dtype

    # Default tile 64 rows: for a few hundred rows this yields >= 2 grid steps
    # per TensorCore on v7x while staying a full (8,128)-aligned tile.
    tm = min(tile_rows, _round_up(N, 8))
    n_pad = _round_up(N, tm)
    n_tiles = n_pad // tm

    emb_p = emb if n_pad == N else jnp.pad(emb, ((0, n_pad - N), (0, 0)))
    wkv = jnp.concatenate([wk, wv], axis=1)     # (E, 2L)
    bkv = jnp.concatenate([bk, bv], axis=1)     # (1, 2L)

    kernel = functools.partial(fused_attention_kernel, n_valid=N,
                               scale=1.0 / (float(E) ** 0.5), latent=L)

    attw_p, psum_p = pl.pallas_call(
        kernel,
        out_shape=(jax.ShapeDtypeStruct((n_pad, n_pad), dtype),
                   jax.ShapeDtypeStruct((n_tiles * 8, L), jnp.float32)),
        grid_spec=pltpu.PrefetchScalarGridSpec(
            num_scalar_prefetch=0,
            grid=(n_tiles,),
            in_specs=[
                pl.BlockSpec((n_pad, E), lambda i: (0, 0)),    # emb, all rows (resident)
                pl.BlockSpec((tm, E), lambda i: (i, 0)),       # emb query-row tile
                pl.BlockSpec((E, L), lambda i: (0, 0)),        # Wq
                pl.BlockSpec((1, L), lambda i: (0, 0)),        # bq
                pl.BlockSpec((E, 2 * L), lambda i: (0, 0)),    # Wk|Wv fused
                pl.BlockSpec((1, 2 * L), lambda i: (0, 0)),    # bk|bv fused
            ],
            out_specs=[
                pl.BlockSpec((tm, n_pad), lambda i: (i, 0)),   # att_weights (lane-dense)
                pl.BlockSpec((8, L), lambda i: (i, 0)),        # per-tile partial sums
            ],
        ),
        compiler_params=pltpu.CompilerParams(
            dimension_semantics=("parallel",),
            vmem_limit_bytes=40 * 1024 * 1024,   # > v5e 16 MiB default, < v7x 64 MiB physical
        ),
    )(emb_p, emb_p, wq, bq, wkv, bkv)

    att_weights = attw_p[:N, :N]

    # z = mean_rows((attw @ V) @ Wo + bo) == (sum_rows(attw @ V) / N) @ Wo + bo
    psum_total = jnp.sum(psum_p.reshape(n_tiles, 8, L)[:, 0, :], axis=0)   # (L,) f32
    z = ((psum_total / float(N)) @ wo.astype(jnp.float32)
         + bo[0].astype(jnp.float32)).astype(dtype)
    if eval_mode:
        return att_weights, z
    output = ((z.astype(jnp.float32) @ wd.astype(jnp.float32))
              + bd[0].astype(jnp.float32)).astype(dtype)
    return att_weights, z, output


# ------------------------------------------------------------------ params / reference
def init_params(key, embed_dim, latent_dim, hvgs, dtype=jnp.float32):
    """Weights stored as (in, out), i.e. y = x @ W + b (== PyTorch x @ W^T + b)."""
    keys = jax.random.split(key, 10)

    def lin(kw, kb, fan_in, fan_out):
        s = 1.0 / (fan_in ** 0.5)
        w = jax.random.uniform(kw, (fan_in, fan_out), dtype, -s, s)
        b = jax.random.uniform(kb, (1, fan_out), dtype, -s, s)
        return w, b

    wq, bq = lin(keys[0], keys[1], embed_dim, latent_dim)
    wk, bk = lin(keys[2], keys[3], embed_dim, latent_dim)
    wv, bv = lin(keys[4], keys[5], embed_dim, latent_dim)
    wo, bo = lin(keys[6], keys[7], latent_dim, embed_dim)
    wd, bd = lin(keys[8], keys[9], hvgs, hvgs)
    return (wq, bq, wk, bk, wv, bv, wo, bo, wd, bd)


def sg_models_ref(emb, params):
    """Pure-JAX reference matching the PyTorch forward (non-eval)."""
    wq, bq, wk, bk, wv, bv, wo, bo, wd, bd = params
    E = emb.shape[-1]
    q = emb @ wq + bq
    k = emb @ wk + bk
    v = emb @ wv + bv
    s = (q @ k.T) / (E ** 0.5)
    s = s - jnp.max(s, axis=-1, keepdims=True)
    p = jnp.exp(s)
    w = p / jnp.sum(p, axis=-1, keepdims=True)
    rows = (w @ v) @ wo + bo
    z = jnp.mean(rows, axis=0)
    output = z @ wd + bd[0]
    return w, z, output


if __name__ == "__main__":
    key = jax.random.PRNGKey(0)
    kx, kp = jax.random.split(key)

    # Small, module-consistent shapes: embed_dim == hvgs (required by decoder Linear).
    n_spots, embed_dim, latent_dim, hvgs = 200, 128, 64, 128

    emb = jax.random.normal(kx, (n_spots, embed_dim), dtype=jnp.float32)
    params = init_params(kp, embed_dim, latent_dim, hvgs)

    att_w, z, out = sg_models_forward(emb, params, tile_rows=64, eval_mode=False)
    (att_w, z, out) = jax.block_until_ready((att_w, z, out))

    att_w_r, z_r, out_r = sg_models_ref(emb, params)

    assert att_w.shape == (n_spots, n_spots), att_w.shape
    assert z.shape == (embed_dim,), z.shape
    assert out.shape == (hvgs,), out.shape
    assert jnp.allclose(att_w, att_w_r, atol=2e-5, rtol=2e-5), float(
        jnp.max(jnp.abs(att_w - att_w_r)))
    assert jnp.allclose(z, z_r, atol=5e-5, rtol=5e-5), float(
        jnp.max(jnp.abs(z - z_r)))
    assert jnp.allclose(out, out_r, atol=2e-4, rtol=2e-4), float(
        jnp.max(jnp.abs(out - out_r)))

    print("KERNEL_OK")
</pallas_src>

<mosaic_0001>
module attributes {stable_mosaic.version = 11 : i64} {
  func.func @fused_attention_kernel(%arg0: i32, %arg1: memref<256x128xf32, #tpu.memory_space<vmem>>, %arg2: memref<64x128xf32, #tpu.memory_space<vmem>>, %arg3: memref<128x64xf32, #tpu.memory_space<vmem>>, %arg4: memref<1x64xf32, #tpu.memory_space<vmem>>, %arg5: memref<128x128xf32, #tpu.memory_space<vmem>>, %arg6: memref<1x128xf32, #tpu.memory_space<vmem>>, %arg7: memref<64x256xf32, #tpu.memory_space<vmem>>, %arg8: memref<8x64xf32, #tpu.memory_space<vmem>>) attributes {dimension_semantics = [#tpu.dimension_semantics<parallel>], iteration_bounds = array<i64: 4>, scalar_prefetch = 0 : i64, scratch_operands = 0 : i64, tpu.core_type = #tpu.core_type<tc>, window_params = [{pipeline_mode = #tpu.pipeline_mode<synchronous>, transform_indices = @transform_0, window_bounds = array<i64: 256, 128>}, {transform_indices = @transform_1, window_bounds = array<i64: 64, 128>}, {pipeline_mode = #tpu.pipeline_mode<synchronous>, transform_indices = @transform_2, window_bounds = array<i64: 128, 64>}, {pipeline_mode = #tpu.pipeline_mode<synchronous>, transform_indices = @transform_3, window_bounds = array<i64: 1, 64>}, {pipeline_mode = #tpu.pipeline_mode<synchronous>, transform_indices = @transform_4, window_bounds = array<i64: 128, 128>}, {pipeline_mode = #tpu.pipeline_mode<synchronous>, transform_indices = @transform_5, window_bounds = array<i64: 1, 128>}, {transform_indices = @transform_6, window_bounds = array<i64: 64, 256>}, {transform_indices = @transform_7, window_bounds = array<i64: 8, 64>}]} {
    %c0 = arith.constant 0 : index
    %c0_0 = arith.constant 0 : index
    %0 = vector.load %arg2[%c0, %c0_0] : memref<64x128xf32, #tpu.memory_space<vmem>>, vector<64x128xf32>
    %c0_1 = arith.constant 0 : index
    %c0_2 = arith.constant 0 : index
    %1 = vector.load %arg3[%c0_1, %c0_2] : memref<128x64xf32, #tpu.memory_space<vmem>>, vector<128x64xf32>
    %cst = arith.constant dense<0.000000e+00> : vector<64x64xf32>
    %2 = tpu.matmul %0, %1, %cst {dimension_numbers = #tpu.dot_dimension_numbers<[1], [0], [0], [1], [0, 0, 1, 1], [], []>} : vector<64x128xf32>, vector<128x64xf32>, vector<64x64xf32> -> vector<64x64xf32>
    %c0_3 = arith.constant 0 : index
    %c0_4 = arith.constant 0 : index
    %3 = vector.load %arg4[%c0_3, %c0_4] : memref<1x64xf32, #tpu.memory_space<vmem>>, vector<1x64xf32>
    %4 = vector.broadcast %3 : vector<1x64xf32> to vector<64x64xf32>
    %5 = arith.addf %2, %4 : vector<64x64xf32>
    %cst_5 = arith.constant 0.0883883461 : f32
    %6 = vector.broadcast %cst_5 : f32 to vector<64x64xf32>
    %7 = arith.mulf %5, %6 : vector<64x64xf32>
    %c0_6 = arith.constant 0 : index
    %c0_7 = arith.constant 0 : index
    %8 = vector.load %arg1[%c0_6, %c0_7] : memref<256x128xf32, #tpu.memory_space<vmem>>, vector<256x128xf32>
    %c0_8 = arith.constant 0 : index
    %c0_9 = arith.constant 0 : index
    %9 = vector.load %arg5[%c0_8, %c0_9] : memref<128x128xf32, #tpu.memory_space<vmem>>, vector<128x128xf32>
    %cst_10 = arith.constant dense<0.000000e+00> : vector<256x128xf32>
    %10 = tpu.matmul %8, %9, %cst_10 {dimension_numbers = #tpu.dot_dimension_numbers<[1], [0], [0], [1], [0, 0, 1, 1], [], []>} : vector<256x128xf32>, vector<128x128xf32>, vector<256x128xf32> -> vector<256x128xf32>
    %c0_11 = arith.constant 0 : index
    %c0_12 = arith.constant 0 : index
    %11 = vector.load %arg6[%c0_11, %c0_12] : memref<1x128xf32, #tpu.memory_space<vmem>>, vector<1x128xf32>
    %12 = vector.broadcast %11 : vector<1x128xf32> to vector<256x128xf32>
    %13 = arith.addf %10, %12 : vector<256x128xf32>
    %14 = vector.extract_strided_slice %13 {offsets = [0, 0], sizes = [256, 64], strides = [1, 1]} : vector<256x128xf32> to vector<256x64xf32>
    %15 = vector.extract_strided_slice %13 {offsets = [0, 64], sizes = [256, 64], strides = [1, 1]} : vector<256x128xf32> to vector<256x64xf32>
    %cst_13 = arith.constant dense<0.000000e+00> : vector<64x256xf32>
    %16 = tpu.matmul %7, %14, %cst_13 {dimension_numbers = #tpu.dot_dimension_numbers<[1], [1], [0], [0], [0, 0, 1, 0], [], []>} : vector<64x64xf32>, vector<256x64xf32>, vector<64x256xf32> -> vector<64x256xf32>
    %17 = tpu.iota {dimensions = array<i32: 1>} : vector<64x256xi32>
    %c200_i32 = arith.constant 200 : i32
    %18 = vector.broadcast %c200_i32 : i32 to vector<64x256xi32>
    %19 = arith.cmpi slt, %17, %18 : vector<64x256xi32>
    %cst_14 = arith.constant -1.000000e+30 : f32
    %20 = vector.broadcast %cst_14 : f32 to vector<64x256xf32>
    %21 = arith.select %19, %16, %20 : vector<64x256xi1>, vector<64x256xf32>
    %cst_15 = arith.constant dense<0xFF800000> : vector<64xf32>
    %22 = vector.multi_reduction <maximumf>, %21, %cst_15 [1] : vector<64x256xf32> to vector<64xf32>
    %23 = vector.shape_cast %22 : vector<64xf32> to vector<64x1xf32>
    %24 = vector.broadcast %23 : vector<64x1xf32> to vector<64x256xf32>
    %25 = arith.subf %21, %24 : vector<64x256xf32>
    %26 = math.exp %25 : vector<64x256xf32>
    %cst_16 = arith.constant dense<0.000000e+00> : vector<64xf32>
    %27 = vector.multi_reduction <add>, %26, %cst_16 [1] : vector<64x256xf32> to vector<64xf32>
    %28 = vector.shape_cast %27 : vector<64xf32> to vector<64x1xf32>
    %29 = tpu.reciprocal %28 : vector<64x1xf32> -> vector<64x1xf32>
    %30 = vector.broadcast %29 : vector<64x1xf32> to vector<64x256xf32>
    %31 = arith.mulf %26, %30 : vector<64x256xf32>
    %c0_17 = arith.constant 0 : index
    %c0_18 = arith.constant 0 : index
    %32 = vector.load %arg7[%c0_17, %c0_18] : memref<64x256xf32, #tpu.memory_space<vmem>>, vector<64x256xf32>
    tpu.vector_store %arg7[%c0_17, %c0_18], %31 {strides = array<i32>} : memref<64x256xf32, #tpu.memory_space<vmem>>, vector<64x256xf32>,
    %33 = tpu.iota {dimensions = array<i32: 0>} : vector<64x1xi32>
    %c64_i32 = arith.constant 64 : i32
    %34 = arith.muli %arg0, %c64_i32 : i32
    %35 = vector.broadcast %34 : i32 to vector<64x1xi32>
    %36 = arith.addi %33, %35 : vector<64x1xi32>
    %c200_i32_19 = arith.constant 200 : i32
    %37 = vector.broadcast %c200_i32_19 : i32 to vector<64x1xi32>
    %38 = arith.cmpi slt, %36, %37 : vector<64x1xi32>
    %cst_20 = arith.constant 0.000000e+00 : f32
    %39 = vector.shape_cast %38 : vector<64x1xi1> to vector<64x1xi1>
    %40 = vector.broadcast %39 : vector<64x1xi1> to vector<64x256xi1>
    %41 = vector.broadcast %cst_20 : f32 to vector<64x256xf32>
    %42 = arith.select %40, %31, %41 : vector<64x256xi1>, vector<64x256xf32>
    %cst_21 = arith.constant dense<0.000000e+00> : vector<256xf32>
    %43 = vector.multi_reduction <add>, %42, %cst_21 [0] : vector<64x256xf32> to vector<256xf32>
    %44 = vector.shape_cast %43 : vector<256xf32> to vector<1x256xf32>
    %cst_22 = arith.constant dense<0.000000e+00> : vector<1x64xf32>
    %45 = tpu.matmul %44, %15, %cst_22 {dimension_numbers = #tpu.dot_dimension_numbers<[1], [0], [0], [1], [0, 0, 1, 1], [], []>} : vector<1x256xf32>, vector<256x64xf32>, vector<1x64xf32> -> vector<1x64xf32>
    %46 = vector.shape_cast %45 : vector<1x64xf32> to vector<1x64xf32>
    %47 = vector.broadcast %46 : vector<1x64xf32> to vector<8x64xf32>
    %c0_23 = arith.constant 0 : index
    %c0_24 = arith.constant 0 : index
    %48 = vector.load %arg8[%c0_23, %c0_24] : memref<8x64xf32, #tpu.memory_space<vmem>>, vector<8x64xf32>
    tpu.vector_store %arg8[%c0_23, %c0_24], %47 {strides = array<i32>} : memref<8x64xf32, #tpu.memory_space<vmem>>, vector<8x64xf32>,
    return
  }
  func.func @transform_0(%arg0: i32) -> (i32, i32) {
    %c0_i32 = arith.constant 0 : i32
    %c0_i32_0 = arith.constant 0 : i32
    %c0_i32_1 = arith.constant 0 : i32
    return %c0_i32, %c0_i32_0 : i32, i32
  }
  func.func @transform_1(%arg0: i32) -> (i32, i32) {
    %c0_i32 = arith.constant 0 : i32
    %c0_i32_0 = arith.constant 0 : i32
    return %arg0, %c0_i32 : i32, i32
  }
  func.func @transform_2(%arg0: i32) -> (i32, i32) {
    %c0_i32 = arith.constant 0 : i32
    %c0_i32_0 = arith.constant 0 : i32
    %c0_i32_1 = arith.constant 0 : i32
    return %c0_i32, %c0_i32_0 : i32, i32
  }
  func.func @transform_3(%arg0: i32) -> (i32, i32) {
    %c0_i32 = arith.constant 0 : i32
    %c0_i32_0 = arith.constant 0 : i32
    %c0_i32_1 = arith.constant 0 : i32
    return %c0_i32, %c0_i32_0 : i32, i32
  }
  func.func @transform_4(%arg0: i32) -> (i32, i32) {
    %c0_i32 = arith.constant 0 : i32
    %c0_i32_0 = arith.constant 0 : i32
    %c0_i32_1 = arith.constant 0 : i32
    return %c0_i32, %c0_i32_0 : i32, i32
  }
  func.func @transform_5(%arg0: i32) -> (i32, i32) {
    %c0_i32 = arith.constant 0 : i32
    %c0_i32_0 = arith.constant 0 : i32
    %c0_i32_1 = arith.constant 0 : i32
    return %c0_i32, %c0_i32_0 : i32, i32
  }
  func.func @transform_6(%arg0: i32) -> (i32, i32) {
    %c0_i32 = arith.constant 0 : i32
    %c0_i32_0 = arith.constant 0 : i32
    return %arg0, %c0_i32 : i32, i32
  }
  func.func @transform_7(%arg0: i32) -> (i32, i32) {
    %c0_i32 = arith.constant 0 : i32
    %c0_i32_0 = arith.constant 0 : i32
    return %arg0, %c0_i32 : i32, i32
  }
}

</mosaic_0001>

<llo_original>
// kernel: sg_models_forward.1
$region0: #{sg_models_forward.1}
  #allocation0 [shape = 'u32[]', space=smem, size = 0x4, offset = 0x4, fixed_abs, tag = 'smem constant byte address 0x4 - core index']
  #allocation1 [shape = 'u32[72,128]{1,0:T(1,128)}', space=vmem, size = 0x9000, scoped, tag = 'internal scratch']
  %s0 = inlined_call_operand.vmem [shape: f32[256,128], index: 0, kind: input, shape index: {}, may-alias: {0,1}]
  %s1 = inlined_call_operand.vmem [shape: f32[256,128], index: 1, kind: input, shape index: {}, may-alias: {0,1}]
  %s2 = inlined_call_operand.vmem [shape: f32[128,64], index: 2, kind: input, shape index: {}]
  %s3 = inlined_call_operand.vmem [shape: f32[1,64], index: 3, kind: input, shape index: {}]
  %s4 = inlined_call_operand.vmem [shape: f32[128,128], index: 4, kind: input, shape index: {}]
  %s5 = inlined_call_operand.vmem [shape: f32[1,128], index: 5, kind: input, shape index: {}]
  %s6 = inlined_call_operand.vmem [shape: f32[256,256], index: 6, kind: output, shape index: {0}]
  %s7 = inlined_call_operand.vmem [shape: f32[32,64], index: 7, kind: output, shape index: {1}]
  %8 = xla_tuple %s6, %s7
  %s9 = sld [smem:[#allocation0]]
  $region65: #{sg_models_forward.1} parent=0
    _
  %s11 = ssub.s32 1, %s9
  %s12 = scalar_select 0, %s11, %s9
  loop: start=0, step=1, limit=6
  $region2: #{sg_models_forward.1} parent=0 // loop_pre_header
    _
  $region3: #{sg_models_forward.1} parent=0 // loop_header
    %s14 = sphi 0, %s18
    %p15 = scmp.ge.s32.totalorder %s14, 6
    %s22 = sphi 0, %s22
    %s24 = sphi 0, %s22
    %s25 = sphi 0, %s24
    %s39 = sphi 0, %s25
    %s45 = sphi 0, %s47
    %s48 = sphi 0, %s45
    %s49 = sphi 0, %s48
    %s65 = sphi 0, %s49
    %s69 = sphi 0, %s69
    %s71 = sphi 0, %s69
    %s72 = sphi 0, %s71
    %s86 = sphi 0, %s72
    %s90 = sphi 0, %s90
    %s92 = sphi 0, %s90
    %s93 = sphi 0, %s92
    %s107 = sphi 0, %s93
    %s111 = sphi 0, %s111
    %s113 = sphi 0, %s111
    %s114 = sphi 0, %s113
    %s128 = sphi 0, %s114
    %s132 = sphi 0, %s132
    %s134 = sphi 0, %s132
    %s135 = sphi 0, %s134
    %s149 = sphi 0, %s135
    %s155 = sphi 0, %s157
    %s158 = sphi 0, %s155
    %s159 = sphi 0, %s158
    %s175 = sphi 0, %s159
    %s181 = sphi 0, %s183
    %s184 = sphi 0, %s181
    %s185 = sphi 0, %s184
    %s201 = sphi 0, %s185
  $region4: #{sg_models_forward.1} parent=0 // loop_header_branch
    %17 = sbr.rel (%p15) target = $region8
  $region5: #{sg_models_forward.1} parent=0 // loop_body
    %s19 = ssub.s32 %s14, 1
    %s20 = ssub.s32 %s14, 2
    %s21 = sadd.s32 %s14, 1
    %s23 = sadd.s32 %s22, 1
    %p26 = scmp.eq.s32.totalorder %s14, 3
    %p27 = scmp.ne.s32.totalorder %s22, %s24
    %p28 = scmp.eq.s32.totalorder %s14, 0
    %p29 = por %p27, %p28
    %p30 = scmp.ne.s32.totalorder %s22, %s24
    %p31 = scmp.eq.s32.totalorder %s19, 3
    %p32 = por %p30, %p31
    %p33 = scmp.ne.s32.totalorder %s24, %s25
    %p34 = scmp.eq.s32.totalorder %s19, 0
    %p35 = por %p33, %p34
    %p36 = scmp.ne.s32.totalorder %s24, %s25
    %p37 = scmp.eq.s32.totalorder %s20, 3
    %p38 = por %p36, %p37
    %p40 = scmp.ne.s32.totalorder %s25, %s39
    %p41 = scmp.eq.s32.totalorder %s20, 0
    %p42 = por %p40, %p41
    %s43 = ssub.s32 %s14, %s21
    %p44 = scmp.eq.s32.totalorder %s43, 0
    %s46 = sadd.s32 %s45, 1
    %s47 = scalar_select %p44, %s45, %s46
    %p50 = pneg %p44
    %p51 = scmp.eq.s32.totalorder %s14, 3
    %p52 = por %p50, %p51
    %p53 = scmp.ne.s32.totalorder %s45, %s48
    %p54 = scmp.eq.s32.totalorder %s14, 0
    %p55 = por %p53, %p54
    %p56 = scmp.ne.s32.totalorder %s45, %s48
    %p57 = scmp.eq.s32.totalorder %s19, 3
    %p58 = por %p56, %p57
    %p59 = scmp.ne.s32.totalorder %s48, %s49
    %p60 = scmp.eq.s32.totalorder %s19, 0
    %p61 = por %p59, %p60
    %p62 = scmp.ne.s32.totalorder %s48, %s49
    %p63 = scmp.eq.s32.totalorder %s20, 3
    %p64 = por %p62, %p63
    %p66 = scmp.ne.s32.totalorder %s49, %s65
    %p67 = scmp.eq.s32.totalorder %s20, 0
    %p68 = por %p66, %p67
    %s70 = sadd.s32 %s69, 1
    %p73 = scmp.eq.s32.totalorder %s14, 3
    %p74 = scmp.ne.s32.totalorder %s69, %s71
    %p75 = scmp.eq.s32.totalorder %s14, 0
    %p76 = por %p74, %p75
    %p77 = scmp.ne.s32.totalorder %s69, %s71
    %p78 = scmp.eq.s32.totalorder %s19, 3
    %p79 = por %p77, %p78
    %p80 = scmp.ne.s32.totalorder %s71, %s72
    %p81 = scmp.eq.s32.totalorder %s19, 0
    %p82 = por %p80, %p81
    %p83 = scmp.ne.s32.totalorder %s71, %s72
    %p84 = scmp.eq.s32.totalorder %s20, 3
    %p85 = por %p83, %p84
    %p87 = scmp.ne.s32.totalorder %s72, %s86
    %p88 = scmp.eq.s32.totalorder %s20, 0
    %p89 = por %p87, %p88
    %s91 = sadd.s32 %s90, 1
    %p94 = scmp.eq.s32.totalorder %s14, 3
    %p95 = scmp.ne.s32.totalorder %s90, %s92
    %p96 = scmp.eq.s32.totalorder %s14, 0
    %p97 = por %p95, %p96
    %p98 = scmp.ne.s32.totalorder %s90, %s92
    %p99 = scmp.eq.s32.totalorder %s19, 3
    %p100 = por %p98, %p99
    %p101 = scmp.ne.s32.totalorder %s92, %s93
    %p102 = scmp.eq.s32.totalorder %s19, 0
    %p103 = por %p101, %p102
    %p104 = scmp.ne.s32.totalorder %s92, %s93
    %p105 = scmp.eq.s32.totalorder %s20, 3
    %p106 = por %p104, %p105
    %p108 = scmp.ne.s32.totalorder %s93, %s107
    %p109 = scmp.eq.s32.totalorder %s20, 0
    %p110 = por %p108, %p109
    %s112 = sadd.s32 %s111, 1
    %p115 = scmp.eq.s32.totalorder %s14, 3
    %p116 = scmp.ne.s32.totalorder %s111, %s113
    %p117 = scmp.eq.s32.totalorder %s14, 0
    %p118 = por %p116, %p117
    %p119 = scmp.ne.s32.totalorder %s111, %s113
    %p120 = scmp.eq.s32.totalorder %s19, 3
    %p121 = por %p119, %p120
    %p122 = scmp.ne.s32.totalorder %s113, %s114
    %p123 = scmp.eq.s32.totalorder %s19, 0
    %p124 = por %p122, %p123
    %p125 = scmp.ne.s32.totalorder %s113, %s114
    %p126 = scmp.eq.s32.totalorder %s20, 3
    %p127 = por %p125, %p126
    %p129 = scmp.ne.s32.totalorder %s114, %s128
    %p130 = scmp.eq.s32.totalorder %s20, 0
    %p131 = por %p129, %p130
    %s133 = sadd.s32 %s132, 1
    %p136 = scmp.eq.s32.totalorder %s14, 3
    %p137 = scmp.ne.s32.totalorder %s132, %s134
    %p138 = scmp.eq.s32.totalorder %s14, 0
    %p139 = por %p137, %p138
    %p140 = scmp.ne.s32.totalorder %s132, %s134
    %p141 = scmp.eq.s32.totalorder %s19, 3
    %p142 = por %p140, %p141
    %p143 = scmp.ne.s32.totalorder %s134, %s135
    %p144 = scmp.eq.s32.totalorder %s19, 0
    %p145 = por %p143, %p144
    %p146 = scmp.ne.s32.totalorder %s134, %s135
    %p147 = scmp.eq.s32.totalorder %s20, 3
    %p148 = por %p146, %p147
    %p150 = scmp.ne.s32.totalorder %s135, %s149
    %p151 = scmp.eq.s32.totalorder %s20, 0
    %p152 = por %p150, %p151
    %s153 = ssub.s32 %s14, %s21
    %p154 = scmp.eq.s32.totalorder %s153, 0
    %s156 = sadd.s32 %s155, 1
    %s157 = scalar_select %p154, %s155, %s156
    %p160 = pneg %p154
    %p161 = scmp.eq.s32.totalorder %s14, 3
    %p162 = por %p160, %p161
    %p163 = scmp.ne.s32.totalorder %s155, %s158
    %p164 = scmp.eq.s32.totalorder %s14, 0
    %p165 = por %p163, %p164
    %p166 = scmp.ne.s32.totalorder %s155, %s158
    %p167 = scmp.eq.s32.totalorder %s19, 3
    %p168 = por %p166, %p167
    %p169 = scmp.ne.s32.totalorder %s158, %s159
    %p170 = scmp.eq.s32.totalorder %s19, 0
    %p171 = por %p169, %p170
    %p172 = scmp.ne.s32.totalorder %s158, %s159
    %p173 = scmp.eq.s32.totalorder %s20, 3
    %p174 = por %p172, %p173
    %p176 = scmp.ne.s32.totalorder %s159, %s175
    %p177 = scmp.eq.s32.totalorder %s20, 0
    %p178 = por %p176, %p177
    %s179 = ssub.s32 %s14, %s21
    %p180 = scmp.eq.s32.totalorder %s179, 0
    %s182 = sadd.s32 %s181, 1
    %s183 = scalar_select %p180, %s181, %s182
    %p186 = pneg %p180
    %p187 = scmp.eq.s32.totalorder %s14, 3
    %p188 = por %p186, %p187
    %p189 = scmp.ne.s32.totalorder %s181, %s184
    %p190 = scmp.eq.s32.totalorder %s14, 0
    %p191 = por %p189, %p190
    %p192 = scmp.ne.s32.totalorder %s181, %s184
    %p193 = scmp.eq.s32.totalorder %s19, 3
    %p194 = por %p192, %p193
    %p195 = scmp.ne.s32.totalorder %s184, %s185
    %p196 = scmp.eq.s32.totalorder %s19, 0
    %p197 = por %p195, %p196
    %p198 = scmp.ne.s32.totalorder %s184, %s185
    %p199 = scmp.eq.s32.totalorder %s20, 3
    %p200 = por %p198, %p199
    %p202 = scmp.ne.s32.totalorder %s185, %s201
    %p203 = scmp.eq.s32.totalorder %s20, 0
    %p204 = por %p202, %p203
    %p205 = scmp.le.s32.totalorder 1, %s14
    %p206 = scmp.lt.s32.totalorder %s14, 5
    %p207 = pnand %p205, %p206
    %p208 = pneg %p207
    // Predicated region
    $region9: #{sg_models_forward.1} parent=5 // pred_check
      _
    $region10: #{sg_models_forward.1} parent=5 // pred_check_branch
      %210 = sbr.rel (%p207) target = $region12
    $region11: #{sg_models_forward.1} parent=5 // pred_region
      %s211 = ssub.s32 %s14, 1
      // Predicated region
      $region13: #{sg_models_forward.1} parent=11 // pred_check
        %p212 = pneg %p35
      $region14: #{sg_models_forward.1} parent=11 // pred_check_branch
        %214 = sbr.rel (%p212) target = $region16
      $region15: #{sg_models_forward.1} parent=11 // pred_region
        _
      $region16: #{sg_models_forward.1} parent=11 // pred_fallthru
        _
      // Predicated region
      $region17: #{sg_models_forward.1} parent=11 // pred_check
        %p215 = pneg %p82
      $region18: #{sg_models_forward.1} parent=11 // pred_check_branch
        %217 = sbr.rel (%p215) target = $region20
      $region19: #{sg_models_forward.1} parent=11 // pred_region
        _
      $region20: #{sg_models_forward.1} parent=11 // pred_fallthru
        _
      // Predicated region
      $region21: #{sg_models_forward.1} parent=11 // pred_check
        %p218 = pneg %p103
      $region22: #{sg_models_forward.1} parent=11 // pred_check_branch
        %220 = sbr.rel (%p218) target = $region24
      $region23: #{sg_models_forward.1} parent=11 // pred_region
        _
      $region24: #{sg_models_forward.1} parent=11 // pred_fallthru
        _
      // Predicated region
      $region25: #{sg_models_forward.1} parent=11 // pred_check
        %p221 = pneg %p124
      $region26: #{sg_models_forward.1} parent=11 // pred_check_branch
        %223 = sbr.rel (%p221) target = $region28
      $region27: #{sg_models_forward.1} parent=11 // pred_region
        _
      $region28: #{sg_models_forward.1} parent=11 // pred_fallthru
        _
      // Predicated region
      $region29: #{sg_models_forward.1} parent=11 // pred_check
        %p224 = pneg %p145
      $region30: #{sg_models_forward.1} parent=11 // pred_check_branch
        %226 = sbr.rel (%p224) target = $region32
      $region31: #{sg_models_forward.1} parent=11 // pred_region
        _
      $region32: #{sg_models_forward.1} parent=11 // pred_fallthru
        _
    $region12: #{sg_models_forward.1} parent=5 // pred_fallthru
      _
    %p227 = scmp.lt.s32.totalorder %s14, 4
    // Predicated region
    $region33: #{sg_models_forward.1} parent=5 // pred_check
      %p228 = pneg %p227
    $region34: #{sg_models_forward.1} parent=5 // pred_check_branch
      %230 = sbr.rel (%p228) target = $region36
    $region35: #{sg_models_forward.1} parent=5 // pred_region
      // Predicated region
      $region37: #{sg_models_forward.1} parent=35 // pred_check
        %p231 = pneg %p55
      $region38: #{sg_models_forward.1} parent=35 // pred_check_branch
        %233 = sbr.rel (%p231) target = $region40
      $region39: #{sg_models_forward.1} parent=35 // pred_region
        %s234 = smul.u32 8, %s14
        %p235 = scmp.lt.s32.totalorder %s234, 31
        %s236 = scalar_select %p235, %s234, 31
        %s237 = smul.addr %s236, 8
        %s238 = scalar_lea.vmem %s1, %s237
        %s239 = smul.u32 8, %s14
      $region40: #{sg_models_forward.1} parent=35 // pred_fallthru
        _
    $region36: #{sg_models_forward.1} parent=5 // pred_fallthru
      _
    %p240 = scmp.le.s32.totalorder 1, %s14
    %p241 = scmp.lt.s32.totalorder %s14, 5
    %p242 = pnand %p240, %p241
    %p243 = pneg %p242
    // Predicated region
    $region41: #{sg_models_forward.1} parent=5 // pred_check
      _
    $region42: #{sg_models_forward.1} parent=5 // pred_check_branch
      %245 = sbr.rel (%p242) target = $region44
    $region43: #{sg_models_forward.1} parent=5 // pred_region
      %s246 = ssub.s32 %s14, 1
      %p247 = pneg %p35
      %p248 = pneg %p32
      %s249 = smul.u32 8, %s19
      %p250 = scmp.lt.s32.totalorder %s249, 31
      %s251 = scalar_select %p250, %s249, 31
      %s252 = smul.addr %s251, 8
      %s253 = scalar_lea.vmem %s1, %s252
      %p254 = pneg %p61
      %p255 = pneg %p58
      %p256 = pneg %p82
      %p257 = pneg %p79
      %p258 = pneg %p103
      %p259 = pneg %p100
      %p260 = pneg %p124
      %p261 = pneg %p121
      %p262 = pneg %p145
      %p263 = pneg %p142
      %p264 = pneg %p171
      %p265 = pneg %p168
      %s266 = smul.u32 8, %s19
      %p267 = scmp.lt.s32.totalorder %s266, 31
      %s268 = scalar_select %p267, %s266, 31
      %s269 = smul.addr %s268, 2
      %s270 = smul.addr %s269, 8
      %s271 = scalar_lea.vmem %s6, %s270
      %p272 = pneg %p197
      %p273 = pneg %p194
      %p274 = scmp.lt.s32.totalorder %s19, 3
      %s275 = scalar_select %p274, %s19, 3
      %s276 = smul.addr %s275, 8
      %s277 = scalar_lea.vmem %s7, %s276
      %s278 = smul.u32 8, %s19
      %p279 = scmp.lt.s32.totalorder %s278, 31
      %s280 = scalar_select %p279, %s278, 31
      %s281 = smul.addr %s280, 8
      %s282 = scalar_lea.vmem %s1, %s281
      %s283 = smul.u32 8, %s19
      %s284 = smul.u32 8, %s19
      %p285 = scmp.lt.s32.totalorder %s284, 31
      %s286 = scalar_select %p285, %s284, 31
      %s287 = smul.addr %s286, 2
      %s288 = smul.addr %s287, 8
      %s289 = scalar_lea.vmem %s6, %s288
      %s290 = smul.u32 8, %s19
      %p291 = scmp.lt.s32.totalorder %s19, 3
      %s292 = scalar_select %p291, %s19, 3
      %s293 = smul.addr %s292, 8
      %s294 = scalar_lea.vmem %s7, %s293
      %v295 = vld [vmem:[%s282] sm:$0xff]
      %v296 = vld [vmem:[%s282 + $0x8] sm:$0xff]
      %v297 = vld [vmem:[%s282 + $0x10] sm:$0xff]
      %v298 = vld [vmem:[%s282 + $0x18] sm:$0xff]
      %v299 = vld [vmem:[%s282 + $0x20] sm:$0xff]
      %v300 = vld [vmem:[%s282 + $0x28] sm:$0xff]
      %v301 = vld [vmem:[%s282 + $0x30] sm:$0xff]
      %v302 = vld [vmem:[%s282 + $0x38] sm:$0xff]
      %v303 = vld [vmem:[%s2] sm:$0xff]
      %v304 = vld [vmem:[%s2 + $0x8] sm:$0xff]
      %v305 = vld [vmem:[%s2 + $0x10] sm:$0xff]
      %v306 = vld [vmem:[%s2 + $0x18] sm:$0xff]
      %v307 = vld [vmem:[%s2 + $0x20] sm:$0xff]
      %v308 = vld [vmem:[%s2 + $0x28] sm:$0xff]
      %v309 = vld [vmem:[%s2 + $0x30] sm:$0xff]
      %v310 = vld [vmem:[%s2 + $0x38] sm:$0xff]
      %v311 = vld [vmem:[%s2 + $0x40] sm:$0xff]
      %v312 = vld [vmem:[%s2 + $0x48] sm:$0xff]
      %v313 = vld [vmem:[%s2 + $0x50] sm:$0xff]
      %v314 = vld [vmem:[%s2 + $0x58] sm:$0xff]
      %v315 = vld [vmem:[%s2 + $0x60] sm:$0xff]
      %v316 = vld [vmem:[%s2 + $0x68] sm:$0xff]
      %v317 = vld [vmem:[%s2 + $0x70] sm:$0xff]
      %v318 = vld [vmem:[%s2 + $0x78] sm:$0xff]
      %v319 = vld [vmem:[%s3] sm:$0x1]
      %v321 = vperm.slane %v319, 0
      %323 = vmatpush.msra.mxu0 %v318
      %324 = vmatpush.msra.mxu0 %v317
      %325 = vmatpush.msra.mxu0 %v316
      %326 = vmatpush.msra.mxu0 %v315
      %327 = vmatpush.msra.mxu0 %v314
      %328 = vmatpush.msra.mxu0 %v313
      %329 = vmatpush.msra.mxu0 %v312
      %330 = vmatpush.msra.mxu0 %v311
      %331 = vmatpush.msra.mxu0 %v310
      %332 = vmatpush.msra.mxu0 %v309
      %333 = vmatpush.msra.mxu0 %v308
      %334 = vmatpush.msra.mxu0 %v307
      %335 = vmatpush.msra.mxu0 %v306
      %336 = vmatpush.msra.mxu0 %v305
      %337 = vmatpush.msra.mxu0 %v304
      %338 = vmatpush.msra.mxu0 %v303
      %339 = vmatmul.f32.gmra.mxu0 %v295
      %v340 = vpop.f32.mrf.mxu0
      %v341 = vadd.f32 %v321, %v340
      %342 = vmatmul.f32.gmra.mxu0 %v296
      %v343 = vpop.f32.mrf.mxu0
      %v344 = vadd.f32 %v321, %v343
      %345 = vmatmul.f32.gmra.mxu0 %v297
      %v346 = vpop.f32.mrf.mxu0
      %v347 = vadd.f32 %v321, %v346
      %348 = vmatmul.f32.gmra.mxu0 %v298
      %v349 = vpop.f32.mrf.mxu0
      %v350 = vadd.f32 %v321, %v349
      %351 = vmatmul.f32.gmra.mxu0 %v299
      %v352 = vpop.f32.mrf.mxu0
      %v353 = vadd.f32 %v321, %v352
      %354 = vmatmul.f32.gmra.mxu0 %v300
      %v355 = vpop.f32.mrf.mxu0
      %v356 = vadd.f32 %v321, %v355
      %357 = vmatmul.f32.gmra.mxu0 %v301
      %v358 = vpop.f32.mrf.mxu0
      %v359 = vadd.f32 %v321, %v358
      %360 = vmatmul.f32.gmra.mxu0 %v302
      %v361 = vpop.f32.mrf.mxu0
      %v362 = vadd.f32 %v321, %v361
      %363 = vdwg.mxu0
      %v364 = vmul.f32 %v341, 0.088388346
      %v365 = vmul.f32 %v344, 0.088388346
      %v366 = vmul.f32 %v347, 0.088388346
      %v367 = vmul.f32 %v350, 0.088388346
      %v368 = vmul.f32 %v353, 0.088388346
      %v369 = vmul.f32 %v356, 0.088388346
      %v370 = vmul.f32 %v359, 0.088388346
      %v371 = vmul.f32 %v362, 0.088388346
      %v372 = vld [vmem:[%s0] sm:$0xff]
      %v373 = vld [vmem:[%s0 + $0x8] sm:$0xff]
      %v374 = vld [vmem:[%s0 + $0x10] sm:$0xff]
      %v375 = vld [vmem:[%s0 + $0x18] sm:$0xff]
      %v376 = vld [vmem:[%s0 + $0x20] sm:$0xff]
      %v377 = vld [vmem:[%s0 + $0x28] sm:$0xff]
      %v378 = vld [vmem:[%s0 + $0x30] sm:$0xff]
      %v379 = vld [vmem:[%s0 + $0x38] sm:$0xff]
      %v380 = vld [vmem:[%s0 + $0x40] sm:$0xff]
      %v381 = vld [vmem:[%s0 + $0x48] sm:$0xff]
      %v382 = vld [vmem:[%s0 + $0x50] sm:$0xff]
      %v383 = vld [vmem:[%s0 + $0x58] sm:$0xff]
      %v384 = vld [vmem:[%s0 + $0x60] sm:$0xff]
      %v385 = vld [vmem:[%s0 + $0x68] sm:$0xff]
      %v386 = vld [vmem:[%s0 + $0x70] sm:$0xff]
      %v387 = vld [vmem:[%s0 + $0x78] sm:$0xff]
      %v388 = vld [vmem:[%s0 + $0x80] sm:$0xff]
      %v389 = vld [vmem:[%s0 + $0x88] sm:$0xff]
      %v390 = vld [vmem:[%s0 + $0x90] sm:$0xff]
      %v391 = vld [vmem:[%s0 + $0x98] sm:$0xff]
      %v392 = vld [vmem:[%s0 + $0xa0] sm:$0xff]
      %v393 = vld [vmem:[%s0 + $0xa8] sm:$0xff]
      %v394 = vld [vmem:[%s0 + $0xb0] sm:$0xff]
      %v395 = vld [vmem:[%s0 + $0xb8] sm:$0xff]
      %v396 = vld [vmem:[%s0 + $0xc0] sm:$0xff]
      %v397 = vld [vmem:[%s0 + $0xc8] sm:$0xff]
      %v398 = vld [vmem:[%s0 + $0xd0] sm:$0xff]
      %v399 = vld [vmem:[%s0 + $0xd8] sm:$0xff]
      %v400 = vld [vmem:[%s0 + $0xe0] sm:$0xff]
      %v401 = vld [vmem:[%s0 + $0xe8] sm:$0xff]
      %v402 = vld [vmem:[%s0 + $0xf0] sm:$0xff]
      %v403 = vld [vmem:[%s0 + $0xf8] sm:$0xff]
      %v404 = vld [vmem:[%s4] sm:$0xff]
      %v405 = vld [vmem:[%s4 + $0x8] sm:$0xff]
      %v406 = vld [vmem:[%s4 + $0x10] sm:$0xff]
      %v407 = vld [vmem:[%s4 + $0x18] sm:$0xff]
      %v408 = vld [vmem:[%s4 + $0x20] sm:$0xff]
      %v409 = vld [vmem:[%s4 + $0x28] sm:$0xff]
      %v410 = vld [vmem:[%s4 + $0x30] sm:$0xff]
      %v411 = vld [vmem:[%s4 + $0x38] sm:$0xff]
      %v412 = vld [vmem:[%s4 + $0x40] sm:$0xff]
      %v413 = vld [vmem:[%s4 + $0x48] sm:$0xff]
      %v414 = vld [vmem:[%s4 + $0x50] sm:$0xff]
      %v415 = vld [vmem:[%s4 + $0x58] sm:$0xff]
      %v416 = vld [vmem:[%s4 + $0x60] sm:$0xff]
      %v417 = vld [vmem:[%s4 + $0x68] sm:$0xff]
      %v418 = vld [vmem:[%s4 + $0x70] sm:$0xff]
      %v419 = vld [vmem:[%s4 + $0x78] sm:$0xff]
      %v420 = vld [vmem:[%s5] sm:$0x1]
      %v422 = vperm.slane %v420, 0
      %424 = vmatpush.msra.mxu0 %v419
      %425 = vmatpush.msra.mxu0 %v418
      %426 = vmatpush.msra.mxu0 %v417
      %427 = vmatpush.msra.mxu0 %v416
      %428 = vmatpush.msra.mxu0 %v415
      %429 = vmatpush.msra.mxu0 %v414
      %430 = vmatpush.msra.mxu0 %v413
      %431 = vmatpush.msra.mxu0 %v412
      %432 = vmatpush.msra.mxu0 %v411
      %433 = vmatpush.msra.mxu0 %v410
      %434 = vmatpush.msra.mxu0 %v409
      %435 = vmatpush.msra.mxu0 %v408
      %436 = vmatpush.msra.mxu0 %v407
      %437 = vmatpush.msra.mxu0 %v406
      %438 = vmatpush.msra.mxu0 %v405
      %439 = vmatpush.msra.mxu0 %v404
      %440 = vmatmul.f32.gmra.mxu0 %v372
      %v441 = vpop.f32.mrf.mxu0
      %v442 = vadd.f32 %v422, %v441
      %443 = vmatmul.f32.gmra.mxu0 %v373
      %v444 = vpop.f32.mrf.mxu0
      %v445 = vadd.f32 %v422, %v444
      %446 = vmatmul.f32.gmra.mxu0 %v374
      %v447 = vpop.f32.mrf.mxu0
      %v448 = vadd.f32 %v422, %v447
      %449 = vmatmul.f32.gmra.mxu0 %v375
      %v450 = vpop.f32.mrf.mxu0
      %v451 = vadd.f32 %v422, %v450
      %452 = vmatmul.f32.gmra.mxu0 %v376
      %v453 = vpop.f32.mrf.mxu0
      %v454 = vadd.f32 %v422, %v453
      %455 = vmatmul.f32.gmra.mxu0 %v377
      %v456 = vpop.f32.mrf.mxu0
      %v457 = vadd.f32 %v422, %v456
      %458 = vmatmul.f32.gmra.mxu0 %v378
      %v459 = vpop.f32.mrf.mxu0
      %v460 = vadd.f32 %v422, %v459
      %461 = vmatmul.f32.gmra.mxu0 %v379
      %v462 = vpop.f32.mrf.mxu0
      %v463 = vadd.f32 %v422, %v462
      %464 = vmatmul.f32.gmra.mxu0 %v380
      %v465 = vpop.f32.mrf.mxu0
      %v466 = vadd.f32 %v422, %v465
      %467 = vmatmul.f32.gmra.mxu0 %v381
      %v468 = vpop.f32.mrf.mxu0
      %v469 = vadd.f32 %v422, %v468
      %470 = vmatmul.f32.gmra.mxu0 %v382
      %v471 = vpop.f32.mrf.mxu0
      %v472 = vadd.f32 %v422, %v471
      %473 = vmatmul.f32.gmra.mxu0 %v383
      %v474 = vpop.f32.mrf.mxu0
      %v475 = vadd.f32 %v422, %v474
      %476 = vmatmul.f32.gmra.mxu0 %v384
      %v477 = vpop.f32.mrf.mxu0
      %v478 = vadd.f32 %v422, %v477
      %479 = vmatmul.f32.gmra.mxu0 %v385
      %v480 = vpop.f32.mrf.mxu0
      %v481 = vadd.f32 %v422, %v480
      %482 = vmatmul.f32.gmra.mxu0 %v386
      %v483 = vpop.f32.mrf.mxu0
      %v484 = vadd.f32 %v422, %v483
      %485 = vmatmul.f32.gmra.mxu0 %v387
      %v486 = vpop.f32.mrf.mxu0
      %v487 = vadd.f32 %v422, %v486
      %488 = vmatmul.f32.gmra.mxu0 %v388
      %v489 = vpop.f32.mrf.mxu0
      %v490 = vadd.f32 %v422, %v489
      %491 = vmatmul.f32.gmra.mxu0 %v389
      %v492 = vpop.f32.mrf.mxu0
      %v493 = vadd.f32 %v422, %v492
      %494 = vmatmul.f32.gmra.mxu0 %v390
      %v495 = vpop.f32.mrf.mxu0
      %v496 = vadd.f32 %v422, %v495
      %497 = vmatmul.f32.gmra.mxu0 %v391
      %v498 = vpop.f32.mrf.mxu0
      %v499 = vadd.f32 %v422, %v498
      %500 = vmatmul.f32.gmra.mxu0 %v392
      %v501 = vpop.f32.mrf.mxu0
      %v502 = vadd.f32 %v422, %v501
      %503 = vmatmul.f32.gmra.mxu0 %v393
      %v504 = vpop.f32.mrf.mxu0
      %v505 = vadd.f32 %v422, %v504
      %506 = vmatmul.f32.gmra.mxu0 %v394
      %v507 = vpop.f32.mrf.mxu0
      %v508 = vadd.f32 %v422, %v507
      %509 = vmatmul.f32.gmra.mxu0 %v395
      %v510 = vpop.f32.mrf.mxu0
      %v511 = vadd.f32 %v422, %v510
      %512 = vmatmul.f32.gmra.mxu0 %v396
      %v513 = vpop.f32.mrf.mxu0
      %v514 = vadd.f32 %v422, %v513
      %515 = vmatmul.f32.gmra.mxu0 %v397
      %v516 = vpop.f32.mrf.mxu0
      %v517 = vadd.f32 %v422, %v516
      %518 = vmatmul.f32.gmra.mxu0 %v398
      %v519 = vpop.f32.mrf.mxu0
      %v520 = vadd.f32 %v422, %v519
      %521 = vmatmul.f32.gmra.mxu0 %v399
      %v522 = vpop.f32.mrf.mxu0
      %v523 = vadd.f32 %v422, %v522
      %524 = vmatmul.f32.gmra.mxu0 %v400
      %v525 = vpop.f32.mrf.mxu0
      %v526 = vadd.f32 %v422, %v525
      %527 = vmatmul.f32.gmra.mxu0 %v401
      %v528 = vpop.f32.mrf.mxu0
      %v529 = vadd.f32 %v422, %v528
      %530 = vmatmul.f32.gmra.mxu0 %v402
      %v531 = vpop.f32.mrf.mxu0
      %v532 = vadd.f32 %v422, %v531
      %533 = vmatmul.f32.gmra.mxu0 %v403
      %v534 = vpop.f32.mrf.mxu0
      %v535 = vadd.f32 %v422, %v534
      %536 = vdwg.mxu0
      %vm537 = vcmask 523264
      %v539 = vsel %vm537, %v364, 0
      %v542 = vsel %vm537, %v365, 0
      %v545 = vsel %vm537, %v366, 0
      %v548 = vsel %vm537, %v367, 0
      %v551 = vsel %vm537, %v368, 0
      %v554 = vsel %vm537, %v369, 0
      %v557 = vsel %vm537, %v370, 0
      %v560 = vsel %vm537, %v371, 0
      %v563 = vsel %vm537, %v442, 0
      %v566 = vsel %vm537, %v445, 0
      %v569 = vsel %vm537, %v448, 0
      %v572 = vsel %vm537, %v451, 0
      %v575 = vsel %vm537, %v454, 0
      %v578 = vsel %vm537, %v457, 0
      %v581 = vsel %vm537, %v460, 0
      %v584 = vsel %vm537, %v463, 0
      %v587 = vsel %vm537, %v466, 0
      %v590 = vsel %vm537, %v469, 0
      %v593 = vsel %vm537, %v472, 0
      %v596 = vsel %vm537, %v475, 0
      %v599 = vsel %vm537, %v478, 0
      %v602 = vsel %vm537, %v481, 0
      %v605 = vsel %vm537, %v484, 0
      %v608 = vsel %vm537, %v487, 0
      %v611 = vsel %vm537, %v490, 0
      %v614 = vsel %vm537, %v493, 0
      %v617 = vsel %vm537, %v496, 0
      %v620 = vsel %vm537, %v499, 0
      %v623 = vsel %vm537, %v502, 0
      %v626 = vsel %vm537, %v505, 0
      %v629 = vsel %vm537, %v508, 0
      %v632 = vsel %vm537, %v511, 0
      %v635 = vsel %vm537, %v514, 0
      %v638 = vsel %vm537, %v517, 0
      %v641 = vsel %vm537, %v520, 0
      %v644 = vsel %vm537, %v523, 0
      %v647 = vsel %vm537, %v526, 0
      %v650 = vsel %vm537, %v529, 0
      %v653 = vsel %vm537, %v532, 0
      %v656 = vsel %vm537, %v535, 0
      %658 = vmatpush.xpose.msra.mxu0 %v608
      %659 = vmatpush.xpose.msra.mxu0 %v605
      %660 = vmatpush.xpose.msra.mxu0 %v602
      %661 = vmatpush.xpose.msra.mxu0 %v599
      %662 = vmatpush.xpose.msra.mxu0 %v596
      %663 = vmatpush.xpose.msra.mxu0 %v593
      %664 = vmatpush.xpose.msra.mxu0 %v590
      %665 = vmatpush.xpose.msra.mxu0 %v587
      %666 = vmatpush.xpose.msra.mxu0 %v584
      %667 = vmatpush.xpose.msra.mxu0 %v581
      %668 = vmatpush.xpose.msra.mxu0 %v578
      %669 = vmatpush.xpose.msra.mxu0 %v575
      %670 = vmatpush.xpose.msra.mxu0 %v572
      %671 = vmatpush.xpose.msra.mxu0 %v569
      %672 = vmatpush.xpose.msra.mxu0 %v566
      %673 = vmatpush.xpose.msra.mxu0 %v563
      %674 = vmatmul.f32.gmra.mxu0 %v539
      %v675 = vpop.f32.mrf.mxu0
      %v676 = vadd.f32 0.0, %v675
      %677 = vmatmul.f32.gmra.mxu0 %v542
      %v678 = vpop.f32.mrf.mxu0
      %v679 = vadd.f32 0.0, %v678
      %680 = vmatmul.f32.gmra.mxu0 %v545
      %v681 = vpop.f32.mrf.mxu0
      %v682 = vadd.f32 0.0, %v681
      %683 = vmatmul.f32.gmra.mxu0 %v548
      %v684 = vpop.f32.mrf.mxu0
      %v685 = vadd.f32 0.0, %v684
      %686 = vmatmul.f32.gmra.mxu0 %v551
      %v687 = vpop.f32.mrf.mxu0
      %v688 = vadd.f32 0.0, %v687
      %689 = vmatmul.f32.gmra.mxu0 %v554
      %v690 = vpop.f32.mrf.mxu0
      %v691 = vadd.f32 0.0, %v690
      %692 = vmatmul.f32.gmra.mxu0 %v557
      %v693 = vpop.f32.mrf.mxu0
      %v694 = vadd.f32 0.0, %v693
      %695 = vmatmul.f32.gmra.mxu0 %v560
      %v696 = vpop.f32.mrf.mxu0
      %v697 = vadd.f32 0.0, %v696
      %698 = vdwg.mxu0
      %699 = vmatpush.xpose.msra.mxu0 %v656
      %700 = vmatpush.xpose.msra.mxu0 %v653
      %701 = vmatpush.xpose.msra.mxu0 %v650
      %702 = vmatpush.xpose.msra.mxu0 %v647
      %703 = vmatpush.xpose.msra.mxu0 %v644
      %704 = vmatpush.xpose.msra.mxu0 %v641
      %705 = vmatpush.xpose.msra.mxu0 %v638
      %706 = vmatpush.xpose.msra.mxu0 %v635
      %707 = vmatpush.xpose.msra.mxu0 %v632
      %708 = vmatpush.xpose.msra.mxu0 %v629
      %709 = vmatpush.xpose.msra.mxu0 %v626
      %710 = vmatpush.xpose.msra.mxu0 %v623
      %711 = vmatpush.xpose.msra.mxu0 %v620
      %712 = vmatpush.xpose.msra.mxu0 %v617
      %713 = vmatpush.xpose.msra.mxu0 %v614
      %714 = vmatpush.xpose.msra.mxu0 %v611
      %715 = vmatmul.f32.gmra.mxu0 %v539
      %v716 = vpop.f32.mrf.mxu0
      %v717 = vadd.f32 0.0, %v716
      %718 = vmatmul.f32.gmra.mxu0 %v542
      %v719 = vpop.f32.mrf.mxu0
      %v720 = vadd.f32 0.0, %v719
      %721 = vmatmul.f32.gmra.mxu0 %v545
      %v722 = vpop.f32.mrf.mxu0
      %v723 = vadd.f32 0.0, %v722
      %724 = vmatmul.f32.gmra.mxu0 %v548
      %v725 = vpop.f32.mrf.mxu0
      %v726 = vadd.f32 0.0, %v725
      %727 = vmatmul.f32.gmra.mxu0 %v551
      %v728 = vpop.f32.mrf.mxu0
      %v729 = vadd.f32 0.0, %v728
      %730 = vmatmul.f32.gmra.mxu0 %v554
      %v731 = vpop.f32.mrf.mxu0
      %v732 = vadd.f32 0.0, %v731
      %733 = vmatmul.f32.gmra.mxu0 %v557
      %v734 = vpop.f32.mrf.mxu0
      %v735 = vadd.f32 0.0, %v734
      %736 = vmatmul.f32.gmra.mxu0 %v560
      %v737 = vpop.f32.mrf.mxu0
      %v738 = vadd.f32 0.0, %v737
      %739 = vdwg.mxu0
      %v740 = vlaneseq
      %v741 = vand.u32 %v740, 127
      %v742 = vadd.s32 %v741, 128
      %vm743 = vcmp.lt.s32.totalorder %v741, 200
      %vm744 = vcmp.lt.s32.totalorder %v742, 200
      %v745 = vsel %vm743, %v676, -1e+30
      %v746 = vsel %vm744, %v717, -1e+30
      %v747 = vsel %vm743, %v679, -1e+30
      %v748 = vsel %vm744, %v720, -1e+30
      %v749 = vsel %vm743, %v682, -1e+30
      %v750 = vsel %vm744, %v723, -1e+30
      %v751 = vsel %vm743, %v685, -1e+30
      %v752 = vsel %vm744, %v726, -1e+30
      %v753 = vsel %vm743, %v688, -1e+30
      %v754 = vsel %vm744, %v729, -1e+30
      %v755 = vsel %vm743, %v691, -1e+30
      %v756 = vsel %vm744, %v732, -1e+30
      %v757 = vsel %vm743, %v694, -1e+30
      %v758 = vsel %vm744, %v735, -1e+30
      %v759 = vsel %vm743, %v697, -1e+30
      %v760 = vsel %vm744, %v738, -1e+30
      %v761 = vmax.f32 %v745, %v746
      %762 = vmax.xlane.f32.xlu0 %v761
      %v763 = vpop.xlane.xlu0 %762
      %v764 = vmax.f32 %v747, %v748
      %765 = vmax.xlane.f32.xlu0 %v764
      %v766 = vpop.xlane.xlu0 %765
      %v767 = vmax.f32 %v749, %v750
      %768 = vmax.xlane.f32.xlu0 %v767
      %v769 = vpop.xlane.xlu0 %768
      %v770 = vmax.f32 %v751, %v752
      %771 = vmax.xlane.f32.xlu0 %v770
      %v772 = vpop.xlane.xlu0 %771
      %v773 = vmax.f32 %v753, %v754
      %774 = vmax.xlane.f32.xlu0 %v773
      %v775 = vpop.xlane.xlu0 %774
      %v776 = vmax.f32 %v755, %v756
      %777 = vmax.xlane.f32.xlu0 %v776
      %v778 = vpop.xlane.xlu0 %777
      %v779 = vmax.f32 %v757, %v758
      %780 = vmax.xlane.f32.xlu0 %v779
      %v781 = vpop.xlane.xlu0 %780
      %v782 = vmax.f32 %v759, %v760
      %783 = vmax.xlane.f32.xlu0 %v782
      %v784 = vpop.xlane.xlu0 %783
      %v785 = vsub.f32 %v745, %v763
      %v786 = vsub.f32 %v746, %v763
      %v787 = vsub.f32 %v747, %v766
      %v788 = vsub.f32 %v748, %v766
      %v789 = vsub.f32 %v749, %v769
      %v790 = vsub.f32 %v750, %v769
      %v791 = vsub.f32 %v751, %v772
      %v792 = vsub.f32 %v752, %v772
      %v793 = vsub.f32 %v753, %v775
      %v794 = vsub.f32 %v754, %v775
      %v795 = vsub.f32 %v755, %v778
      %v796 = vsub.f32 %v756, %v778
      %v797 = vsub.f32 %v757, %v781
      %v798 = vsub.f32 %v758, %v781
      %v799 = vsub.f32 %v759, %v784
      %v800 = vsub.f32 %v760, %v784
      %v801 = vmul.f32 %v785, 1.442695
      %v802 = vpow.pop %v801
      %v803 = vmul.f32 %v786, 1.442695
      %v804 = vpow.pop %v803
      %v805 = vmul.f32 %v787, 1.442695
      %v806 = vpow.pop %v805
      %v807 = vmul.f32 %v788, 1.442695
      %v808 = vpow.pop %v807
      %v809 = vmul.f32 %v789, 1.442695
      %v810 = vpow.pop %v809
      %v811 = vmul.f32 %v790, 1.442695
      %v812 = vpow.pop %v811
      %v813 = vmul.f32 %v791, 1.442695
      %v814 = vpow.pop %v813
      %v815 = vmul.f32 %v792, 1.442695
      %v816 = vpow.pop %v815
      %v817 = vmul.f32 %v793, 1.442695
      %v818 = vpow.pop %v817
      %v819 = vmul.f32 %v794, 1.442695
      %v820 = vpow.pop %v819
      %v821 = vmul.f32 %v795, 1.442695
      %v822 = vpow.pop %v821
      %v823 = vmul.f32 %v796, 1.442695
      %v824 = vpow.pop %v823
      %v825 = vmul.f32 %v797, 1.442695
      %v826 = vpow.pop %v825
      %v827 = vmul.f32 %v798, 1.442695
      %v828 = vpow.pop %v827
      %v829 = vmul.f32 %v799, 1.442695
      %v830 = vpow.pop %v829
      %v831 = vmul.f32 %v800, 1.442695
      %v832 = vpow.pop %v831
      %v833 = vadd.f32 %v802, %v804
      %834 = vadd.xlane.f32.xlu0 %v833
      %v835 = vpop.xlane.xlu0 %834
      %v836 = vadd.f32 %v806, %v808
      %837 = vadd.xlane.f32.xlu0 %v836
      %v838 = vpop.xlane.xlu0 %837
      %v839 = vadd.f32 %v810, %v812
      %840 = vadd.xlane.f32.xlu0 %v839
      %v841 = vpop.xlane.xlu0 %840
      %v842 = vadd.f32 %v814, %v816
      %843 = vadd.xlane.f32.xlu0 %v842
      %v844 = vpop.xlane.xlu0 %843
      %v845 = vadd.f32 %v818, %v820
      %846 = vadd.xlane.f32.xlu0 %v845
      %v847 = vpop.xlane.xlu0 %846
      %v848 = vadd.f32 %v822, %v824
      %849 = vadd.xlane.f32.xlu0 %v848
      %v850 = vpop.xlane.xlu0 %849
      %v851 = vadd.f32 %v826, %v828
      %852 = vadd.xlane.f32.xlu0 %v851
      %v853 = vpop.xlane.xlu0 %852
      %v854 = vadd.f32 %v830, %v832
      %855 = vadd.xlane.f32.xlu0 %v854
      %v856 = vpop.xlane.xlu0 %855
      %v857 = vrcp.pop %v835
      %v858 = vmul.f32 %v835, %v857
      %v859 = vsub.f32 1.0, %v858
      %v860 = vmul.f32 %v857, %v859
      %v861 = vadd.f32 %v857, %v860
      %vm862 = vweird.f32 %v835
      %vm863 = vweird.f32 %v857
      %vm864 = vmor %vm862, %vm863
      %v865 = vsel %vm864, %v857, %v861
      %v866 = vand.u32 2147483647, %v835
      %vm867 = vcmp.eq.f32.partialorder %v866, 8.507059e+37
      %v868 = vand.u32 %v835, 2147483648
      %v869 = vor.u32 1.1754944e-38, %v868
      %v870 = vsel %vm867, %v869, %v865
      %v871 = vrcp.pop %v838
      %v872 = vmul.f32 %v838, %v871
      %v873 = vsub.f32 1.0, %v872
      %v874 = vmul.f32 %v871, %v873
      %v875 = vadd.f32 %v871, %v874
      %vm876 = vweird.f32 %v838
      %vm877 = vweird.f32 %v871
      %vm878 = vmor %vm876, %vm877
      %v879 = vsel %vm878, %v871, %v875
      %v880 = vand.u32 2147483647, %v838
      %vm881 = vcmp.eq.f32.partialorder %v880, 8.507059e+37
      %v882 = vand.u32 %v838, 2147483648
      %v883 = vor.u32 1.1754944e-38, %v882
      %v884 = vsel %vm881, %v883, %v879
      %v885 = vrcp.pop %v841
      %v886 = vmul.f32 %v841, %v885
      %v887 = vsub.f32 1.0, %v886
      %v888 = vmul.f32 %v885, %v887
      %v889 = vadd.f32 %v885, %v888
      %vm890 = vweird.f32 %v841
      %vm891 = vweird.f32 %v885
      %vm892 = vmor %vm890, %vm891
      %v893 = vsel %vm892, %v885, %v889
      %v894 = vand.u32 2147483647, %v841
      %vm895 = vcmp.eq.f32.partialorder %v894, 8.507059e+37
      %v896 = vand.u32 %v841, 2147483648
      %v897 = vor.u32 1.1754944e-38, %v896
      %v898 = vsel %vm895, %v897, %v893
      %v899 = vrcp.pop %v844
      %v900 = vmul.f32 %v844, %v899
      %v901 = vsub.f32 1.0, %v900
      %v902 = vmul.f32 %v899, %v901
      %v903 = vadd.f32 %v899, %v902
      %vm904 = vweird.f32 %v844
      %vm905 = vweird.f32 %v899
      %vm906 = vmor %vm904, %vm905
      %v907 = vsel %vm906, %v899, %v903
      %v908 = vand.u32 2147483647, %v844
      %vm909 = vcmp.eq.f32.partialorder %v908, 8.507059e+37
      %v910 = vand.u32 %v844, 2147483648
      %v911 = vor.u32 1.1754944e-38, %v910
      %v912 = vsel %vm909, %v911, %v907
      %v913 = vrcp.pop %v847
      %v914 = vmul.f32 %v847, %v913
      %v915 = vsub.f32 1.0, %v914
      %v916 = vmul.f32 %v913, %v915
      %v917 = vadd.f32 %v913, %v916
      %vm918 = vweird.f32 %v847
      %vm919 = vweird.f32 %v913
      %vm920 = vmor %vm918, %vm919
      %v921 = vsel %vm920, %v913, %v917
      %v922 = vand.u32 2147483647, %v847
      %vm923 = vcmp.eq.f32.partialorder %v922, 8.507059e+37
      %v924 = vand.u32 %v847, 2147483648
      %v925 = vor.u32 1.1754944e-38, %v924
      %v926 = vsel %vm923, %v925, %v921
      %v927 = vrcp.pop %v850
      %v928 = vmul.f32 %v850, %v927
      %v929 = vsub.f32 1.0, %v928
      %v930 = vmul.f32 %v927, %v929
      %v931 = vadd.f32 %v927, %v930
      %vm932 = vweird.f32 %v850
      %vm933 = vweird.f32 %v927
      %vm934 = vmor %vm932, %vm933
      %v935 = vsel %vm934, %v927, %v931
      %v936 = vand.u32 2147483647, %v850
      %vm937 = vcmp.eq.f32.partialorder %v936, 8.507059e+37
      %v938 = vand.u32 %v850, 2147483648
      %v939 = vor.u32 1.1754944e-38, %v938
      %v940 = vsel %vm937, %v939, %v935
      %v941 = vrcp.pop %v853
      %v942 = vmul.f32 %v853, %v941
      %v943 = vsub.f32 1.0, %v942
      %v944 = vmul.f32 %v941, %v943
      %v945 = vadd.f32 %v941, %v944
      %vm946 = vweird.f32 %v853
      %vm947 = vweird.f32 %v941
      %vm948 = vmor %vm946, %vm947
      %v949 = vsel %vm948, %v941, %v945
      %v950 = vand.u32 2147483647, %v853
      %vm951 = vcmp.eq.f32.partialorder %v950, 8.507059e+37
      %v952 = vand.u32 %v853, 2147483648
      %v953 = vor.u32 1.1754944e-38, %v952
      %v954 = vsel %vm951, %v953, %v949
      %v955 = vrcp.pop %v856
      %v956 = vmul.f32 %v856, %v955
      %v957 = vsub.f32 1.0, %v956
      %v958 = vmul.f32 %v955, %v957
      %v959 = vadd.f32 %v955, %v958
      %vm960 = vweird.f32 %v856
      %vm961 = vweird.f32 %v955
      %vm962 = vmor %vm960, %vm961
      %v963 = vsel %vm962, %v955, %v959
      %v964 = vand.u32 2147483647, %v856
      %vm965 = vcmp.eq.f32.partialorder %v964, 8.507059e+37
      %v966 = vand.u32 %v856, 2147483648
      %v967 = vor.u32 1.1754944e-38, %v966
      %v968 = vsel %vm965, %v967, %v963
      %v969 = vmul.f32 %v802, %v870
      %v970 = vmul.f32 %v804, %v870
      %v971 = vmul.f32 %v806, %v884
      %v972 = vmul.f32 %v808, %v884
      %v973 = vmul.f32 %v810, %v898
      %v974 = vmul.f32 %v812, %v898
      %v975 = vmul.f32 %v814, %v912
      %v976 = vmul.f32 %v816, %v912
      %v977 = vmul.f32 %v818, %v926
      %v978 = vmul.f32 %v820, %v926
      %v979 = vmul.f32 %v822, %v940
      %v980 = vmul.f32 %v824, %v940
      %v981 = vmul.f32 %v826, %v954
      %v982 = vmul.f32 %v828, %v954
      %v983 = vmul.f32 %v830, %v968
      %v984 = vmul.f32 %v832, %v968
      %985 = vst [vmem:[%s289] sm:$0xff] %v969
      %986 = vst [vmem:[%s289 + $0x8] sm:$0xff] %v970
      %987 = vst [vmem:[%s289 + $0x10] sm:$0xff] %v971
      %988 = vst [vmem:[%s289 + $0x18] sm:$0xff] %v972
      %989 = vst [vmem:[%s289 + $0x20] sm:$0xff] %v973
      %990 = vst [vmem:[%s289 + $0x28] sm:$0xff] %v974
      %991 = vst [vmem:[%s289 + $0x30] sm:$0xff] %v975
      %992 = vst [vmem:[%s289 + $0x38] sm:$0xff] %v976
      %993 = vst [vmem:[%s289 + $0x40] sm:$0xff] %v977
      %994 = vst [vmem:[%s289 + $0x48] sm:$0xff] %v978
      %995 = vst [vmem:[%s289 + $0x50] sm:$0xff] %v979
      %996 = vst [vmem:[%s289 + $0x58] sm:$0xff] %v980
      %997 = vst [vmem:[%s289 + $0x60] sm:$0xff] %v981
      %998 = vst [vmem:[%s289 + $0x68] sm:$0xff] %v982
      %999 = vst [vmem:[%s289 + $0x70] sm:$0xff] %v983
      %1000 = vst [vmem:[%s289 + $0x78] sm:$0xff] %v984
      %v1001 = vlaneseq
      %v1002 = vshrl.u32 %v1001, 7
      %v1003 = vadd.s32 %v1002, 8
      %v1004 = vadd.s32 %v1002, 16
      %v1005 = vadd.s32 %v1002, 24
      %v1006 = vadd.s32 %v1002, 32
      %v1007 = vadd.s32 %v1002, 40
      %v1008 = vadd.s32 %v1002, 48
      %v1009 = vadd.s32 %v1002, 56
      %s1010 = smul.u32 %s19, 64
      %v1011 = vstv %s1010
      %v1012 = vadd.s32 %v1002, %v1011
      %v1013 = vadd.s32 %v1003, %v1011
      %v1014 = vadd.s32 %v1004, %v1011
      %v1015 = vadd.s32 %v1005, %v1011
      %v1016 = vadd.s32 %v1006, %v1011
      %v1017 = vadd.s32 %v1007, %v1011
      %v1018 = vadd.s32 %v1008, %v1011
      %v1019 = vadd.s32 %v1009, %v1011
      %vm1020 = vcmp.lt.s32.totalorder %v1012, 200
      %vm1021 = vcmp.lt.s32.totalorder %v1013, 200
      %vm1022 = vcmp.lt.s32.totalorder %v1014, 200
      %vm1023 = vcmp.lt.s32.totalorder %v1015, 200
      %vm1024 = vcmp.lt.s32.totalorder %v1016, 200
      %vm1025 = vcmp.lt.s32.totalorder %v1017, 200
      %vm1026 = vcmp.lt.s32.totalorder %v1018, 200
      %vm1027 = vcmp.lt.s32.totalorder %v1019, 200
      %v1028 = vsel %vm1020, 1, 0
      %v1029 = vsel %vm1021, 1, 0
      %v1030 = vsel %vm1022, 1, 0
      %v1031 = vsel %vm1023, 1, 0
      %v1032 = vsel %vm1024, 1, 0
      %v1033 = vsel %vm1025, 1, 0
      %v1034 = vsel %vm1026, 1, 0
      %v1035 = vsel %vm1027, 1, 0
      %vm1036 = vcmp.eq.s32.totalorder %v1028, 1
      %vm1037 = vcmp.eq.s32.totalorder %v1029, 1
      %vm1038 = vcmp.eq.s32.totalorder %v1030, 1
      %vm1039 = vcmp.eq.s32.totalorder %v1031, 1
      %vm1040 = vcmp.eq.s32.totalorder %v1032, 1
      %vm1041 = vcmp.eq.s32.totalorder %v1033, 1
      %vm1042 = vcmp.eq.s32.totalorder %v1034, 1
      %vm1043 = vcmp.eq.s32.totalorder %v1035, 1
      %v1044 = vsel %vm1036, %v969, 0.0
      %v1045 = vsel %vm1036, %v970, 0.0
      %v1046 = vsel %vm1037, %v971, 0.0
      %v1047 = vsel %vm1037, %v972, 0.0
      %v1048 = vsel %vm1038, %v973, 0.0
      %v1049 = vsel %vm1038, %v974, 0.0
      %v1050 = vsel %vm1039, %v975, 0.0
      %v1051 = vsel %vm1039, %v976, 0.0
      %v1052 = vsel %vm1040, %v977, 0.0
      %v1053 = vsel %vm1040, %v978, 0.0
      %v1054 = vsel %vm1041, %v979, 0.0
      %v1055 = vsel %vm1041, %v980, 0.0
      %v1056 = vsel %vm1042, %v981, 0.0
      %v1057 = vsel %vm1042, %v982, 0.0
      %v1058 = vsel %vm1043, %v983, 0.0
      %v1059 = vsel %vm1043, %v984, 0.0
      %v1060 = vadd.f32 %v1044, %v1046
      %v1061 = vadd.f32 %v1060, %v1048
      %v1062 = vadd.f32 %v1061, %v1050
      %v1063 = vadd.f32 %v1062, %v1052
      %v1064 = vadd.f32 %v1063, %v1054
      %v1065 = vadd.f32 %v1064, %v1056
      %v1066 = vadd.f32 %v1065, %v1058
      %v1067 = vrot.slane %v1066, 4
      %v1068 = vadd.f32 %v1066, %v1067
      %v1069 = vrot.slane %v1068, 2
      %v1070 = vadd.f32 %v1068, %v1069
      %v1071 = vrot.slane %v1070, 1
      %v1072 = vadd.f32 %v1070, %v1071
      %v1073 = vadd.f32 %v1045, %v1047
      %v1074 = vadd.f32 %v1073, %v1049
      %v1075 = vadd.f32 %v1074, %v1051
      %v1076 = vadd.f32 %v1075, %v1053
      %v1077 = vadd.f32 %v1076, %v1055
      %v1078 = vadd.f32 %v1077, %v1057
      %v1079 = vadd.f32 %v1078, %v1059
      %v1080 = vrot.slane %v1079, 4
      %v1081 = vadd.f32 %v1079, %v1080
      %v1082 = vrot.slane %v1081, 2
      %v1083 = vadd.f32 %v1081, %v1082
      %v1084 = vrot.slane %v1083, 1
      %v1085 = vadd.f32 %v1083, %v1084
      %1086 = vrot.lane.b32.xlu0 %v442, 64
      %v1087 = vpop.permute.xlu0 %1086
      %1088 = vrot.lane.b32.xlu0 %v445, 64
      %v1089 = vpop.permute.xlu0 %1088
      %1090 = vrot.lane.b32.xlu0 %v448, 64
      %v1091 = vpop.permute.xlu0 %1090
      %1092 = vrot.lane.b32.xlu0 %v451, 64
      %v1093 = vpop.permute.xlu0 %1092
      %1094 = vrot.lane.b32.xlu0 %v454, 64
      %v1095 = vpop.permute.xlu0 %1094
      %1096 = vrot.lane.b32.xlu0 %v457, 64
      %v1097 = vpop.permute.xlu0 %1096
      %1098 = vrot.lane.b32.xlu0 %v460, 64
      %v1099 = vpop.permute.xlu0 %1098
      %1100 = vrot.lane.b32.xlu0 %v463, 64
      %v1101 = vpop.permute.xlu0 %1100
      %1102 = vrot.lane.b32.xlu0 %v466, 64
      %v1103 = vpop.permute.xlu0 %1102
      %1104 = vrot.lane.b32.xlu0 %v469, 64
      %v1105 = vpop.permute.xlu0 %1104
      %1106 = vrot.lane.b32.xlu0 %v472, 64
      %v1107 = vpop.permute.xlu0 %1106
      %1108 = vrot.lane.b32.xlu0 %v475, 64
      %v1109 = vpop.permute.xlu0 %1108
      %1110 = vrot.lane.b32.xlu0 %v478, 64
      %v1111 = vpop.permute.xlu0 %1110
      %1112 = vrot.lane.b32.xlu0 %v481, 64
      %v1113 = vpop.permute.xlu0 %1112
      %1114 = vrot.lane.b32.xlu0 %v484, 64
      %v1115 = vpop.permute.xlu0 %1114
      %1116 = vrot.lane.b32.xlu0 %v487, 64
      %v1117 = vpop.permute.xlu0 %1116
      %1118 = vrot.lane.b32.xlu0 %v490, 64
      %v1119 = vpop.permute.xlu0 %1118
      %1120 = vrot.lane.b32.xlu0 %v493, 64
      %v1121 = vpop.permute.xlu0 %1120
      %1122 = vrot.lane.b32.xlu0 %v496, 64
      %v1123 = vpop.permute.xlu0 %1122
      %1124 = vrot.lane.b32.xlu0 %v499, 64
      %v1125 = vpop.permute.xlu0 %1124
      %1126 = vrot.lane.b32.xlu0 %v502, 64
      %v1127 = vpop.permute.xlu0 %1126
      %1128 = vrot.lane.b32.xlu0 %v505, 64
      %v1129 = vpop.permute.xlu0 %1128
      %1130 = vrot.lane.b32.xlu0 %v508, 64
      %v1131 = vpop.permute.xlu0 %1130
      %1132 = vrot.lane.b32.xlu0 %v511, 64
      %v1133 = vpop.permute.xlu0 %1132
      %1134 = vrot.lane.b32.xlu0 %v514, 64
      %v1135 = vpop.permute.xlu0 %1134
      %1136 = vrot.lane.b32.xlu0 %v517, 64
      %v1137 = vpop.permute.xlu0 %1136
      %1138 = vrot.lane.b32.xlu0 %v520, 64
      %v1139 = vpop.permute.xlu0 %1138
      %1140 = vrot.lane.b32.xlu0 %v523, 64
      %v1141 = vpop.permute.xlu0 %1140
      %1142 = vrot.lane.b32.xlu0 %v526, 64
      %v1143 = vpop.permute.xlu0 %1142
      %1144 = vrot.lane.b32.xlu0 %v529, 64
      %v1145 = vpop.permute.xlu0 %1144
      %1146 = vrot.lane.b32.xlu0 %v532, 64
      %v1147 = vpop.permute.xlu0 %1146
      %1148 = vrot.lane.b32.xlu0 %v535, 64
      %v1149 = vpop.permute.xlu0 %1148
      %1182 = vmatpush.msra.mxu0 %v1117
      %1183 = vmatpush.msra.mxu0 %v1115
      %1184 = vmatpush.msra.mxu0 %v1113
      %1185 = vmatpush.msra.mxu0 %v1111
      %1186 = vmatpush.msra.mxu0 %v1109
      %1187 = vmatpush.msra.mxu0 %v1107
      %1188 = vmatpush.msra.mxu0 %v1105
      %1189 = vmatpush.msra.mxu0 %v1103
      %1190 = vmatpush.msra.mxu0 %v1101
      %1191 = vmatpush.msra.mxu0 %v1099
      %1192 = vmatpush.msra.mxu0 %v1097
      %1193 = vmatpush.msra.mxu0 %v1095
      %1194 = vmatpush.msra.mxu0 %v1093
      %1195 = vmatpush.msra.mxu0 %v1091
      %1196 = vmatpush.msra.mxu0 %v1089
      %1197 = vmatpush.msra.mxu0 %v1087
      %1198 = vmatmul.f32.gmra.mxu0 %v1072
      %v1199 = vpop.f32.mrf.mxu0
      %v1200 = vadd.f32 0.0, %v1199
      %1201 = vdwg.mxu0
      %1202 = vmatpush.msra.mxu0 %v1149
      %1203 = vmatpush.msra.mxu0 %v1147
      %1204 = vmatpush.msra.mxu0 %v1145
      %1205 = vmatpush.msra.mxu0 %v1143
      %1206 = vmatpush.msra.mxu0 %v1141
      %1207 = vmatpush.msra.mxu0 %v1139
      %1208 = vmatpush.msra.mxu0 %v1137
      %1209 = vmatpush.msra.mxu0 %v1135
      %1210 = vmatpush.msra.mxu0 %v1133
      %1211 = vmatpush.msra.mxu0 %v1131
      %1212 = vmatpush.msra.mxu0 %v1129
      %1213 = vmatpush.msra.mxu0 %v1127
      %1214 = vmatpush.msra.mxu0 %v1125
      %1215 = vmatpush.msra.mxu0 %v1123
      %1216 = vmatpush.msra.mxu0 %v1121
      %1217 = vmatpush.msra.mxu0 %v1119
      %1218 = vmatmul.f32.gmra.mxu0 %v1085
      %v1219 = vpop.f32.mrf.mxu0
      %v1220 = vadd.f32 %v1200, %v1219
      %1221 = vdwg.mxu0
      %v1222 = vperm.slane %v1220, 0
      %1223 = vst.msk [vmem:[%s294] sm:$0xff] %vm537, %v1222
      %s1224 = smul.u32 8, %s19
      %p1225 = scmp.lt.s32.totalorder %s1224, 31
      %s1226 = scalar_select %p1225, %s1224, 31
      %s1227 = smul.addr %s1226, 2
      %s1228 = smul.addr %s1227, 8
      %s1229 = scalar_lea.vmem %s6, %s1228
      %p1230 = scmp.lt.s32.totalorder %s19, 3
      %s1231 = scalar_select %p1230, %s19, 3
      %s1232 = smul.addr %s1231, 8
      %s1233 = scalar_lea.vmem %s7, %s1232
      // Predicated region
      $region45: #{sg_models_forward.1} parent=43 // pred_check
        %p1234 = pneg %p168
      $region46: #{sg_models_forward.1} parent=43 // pred_check_branch
        %1236 = sbr.rel (%p1234) target = $region48
      $region47: #{sg_models_forward.1} parent=43 // pred_region
        %s1237 = smul.u32 8, %s19
      $region48: #{sg_models_forward.1} parent=43 // pred_fallthru
        _
      // Predicated region
      $region49: #{sg_models_forward.1} parent=43 // pred_check
        %p1238 = pneg %p194
      $region50: #{sg_models_forward.1} parent=43 // pred_check_branch
        %1240 = sbr.rel (%p1238) target = $region52
      $region51: #{sg_models_forward.1} parent=43 // pred_region
        _
      $region52: #{sg_models_forward.1} parent=43 // pred_fallthru
        _
    $region44: #{sg_models_forward.1} parent=5 // pred_fallthru
      _
    %p1241 = scmp.le.s32.totalorder 2, %s14
    // Predicated region
    $region53: #{sg_models_forward.1} parent=5 // pred_check
      %p1242 = pneg %p1241
    $region54: #{sg_models_forward.1} parent=5 // pred_check_branch
      %1244 = sbr.rel (%p1242) target = $region56
    $region55: #{sg_models_forward.1} parent=5 // pred_region
      %s1245 = ssub.s32 %s14, 2
      // Predicated region
      $region57: #{sg_models_forward.1} parent=55 // pred_check
        %p1246 = pneg %p174
      $region58: #{sg_models_forward.1} parent=55 // pred_check_branch
        %1248 = sbr.rel (%p1246) target = $region60
      $region59: #{sg_models_forward.1} parent=55 // pred_region
        %s1249 = smul.u32 8, %s20
        %p1250 = scmp.lt.s32.totalorder %s1249, 31
        %s1251 = scalar_select %p1250, %s1249, 31
        %s1252 = smul.addr %s1251, 2
        %s1253 = smul.addr %s1252, 8
        %s1254 = scalar_lea.vmem %s6, %s1253
      $region60: #{sg_models_forward.1} parent=55 // pred_fallthru
        _
      // Predicated region
      $region61: #{sg_models_forward.1} parent=55 // pred_check
        %p1255 = pneg %p200
      $region62: #{sg_models_forward.1} parent=55 // pred_check_branch
        %1257 = sbr.rel (%p1255) target = $region64
      $region63: #{sg_models_forward.1} parent=55 // pred_region
        %p1258 = scmp.lt.s32.totalorder %s20, 3
        %s1259 = scalar_select %p1258, %s20, 3
        %s1260 = smul.addr %s1259, 8
        %s1261 = scalar_lea.vmem %s7, %s1260
      $region64: #{sg_models_forward.1} parent=55 // pred_fallthru
        _
    $region56: #{sg_models_forward.1} parent=5 // pred_fallthru
      _
  $region6: #{sg_models_forward.1} parent=0 // loop_footer
    %s18 = sadd.s32 1, %s14
  $region7: #{sg_models_forward.1} parent=0 // loop_footer_branch
    %13 = sbr.rel target = $region3
  $region8: #{sg_models_forward.1} parent=0 // loop_exit
    _

</llo_original>
